<compile_context>
chip_gen: v5e
topology: v5e:2x2
jax: 0.10.0
libtpu: 0.0.40
codegen_flags: <defaults>
</compile_context>

<pallas_src>
import functools

import numpy as np
import jax
import jax.numpy as jnp
from jax.experimental import pallas as pl
from jax.experimental.pallas import tpu as pltpu

LANES = 128


@functools.lru_cache(maxsize=None)
def _constant_matrices(p, c, vpr):
    """0/1 matrices driving the MXU.

    S (128, 128): column g*C + f sums the P points of voxel g of a packed
      128-lane feature row (input lanes g*P*C + pt*C + f); columns >= VPR*C
      are zero and get sliced off.
    B (VPR, 128): column g*C + f copies the (clamped) point count of voxel g,
      broadcasting the per-voxel normalizer to the packed output lanes.
    """
    s = np.zeros((LANES, LANES), np.float32)
    b = np.zeros((vpr, LANES), np.float32)
    for g in range(vpr):
        for f in range(c):
            b[g, g * c + f] = 1.0
            for pt in range(p):
                s[g * p * c + pt * c + f, g * c + f] = 1.0
    return s, b


def _make_kernel(out_w):
    def kernel(feat_ref, npts_ref, s_ref, b_ref, out_ref):
        x = feat_ref[...]                                           # (T, 128) lane-dense
        # clamp_min(num_points, 1): small exact integers in [1, P].
        cnt = jnp.maximum(npts_ref[...].astype(jnp.float32), 1.0)   # (T, VPR)

        # Point-sum + voxel compaction in a single MXU matmul.  HIGHEST
        # (multi-pass f32) with a 0/1 RHS and f32 accumulation is effectively
        # exact; it keeps the VPU/XLU free for the (HBM-bound) rest.
        summ = jnp.dot(
            x, s_ref[...],
            precision=jax.lax.Precision.HIGHEST,
            preferred_element_type=jnp.float32)[:, :out_w]          # (T, VPR*C)

        # Broadcast the clamped counts to the packed output lanes with a
        # second tiny constant matmul on the MXU.  Counts are integers <= P
        # (exact in bf16) and the matrix is 0/1, so a single default-precision
        # pass is exact.
        norm = jnp.dot(
            cnt, b_ref[...],
            preferred_element_type=jnp.float32)[:, :out_w]          # (T, VPR*C)

        out_ref[...] = (summ / norm).astype(out_ref.dtype)

    return kernel


def _pick_tile_rows(rows, desired):
    """Return (tile_rows, padded_rows).

    Picks the largest 8-aligned tile <= `desired` that divides `rows`.  If
    none exists, keeps the desired tile and reports the padded row count the
    caller must pad to (instead of silently using one whole-array block that
    could blow the VMEM limit).
    """
    desired = max(8, desired - desired % 8)
    if rows <= desired:
        return rows, rows                    # single block (block dim == full dim)
    t = desired
    while t >= 8:
        if rows % t == 0:
            return t, rows
        t -= 8
    return desired, ((rows + desired - 1) // desired) * desired


def mean_voxel_encoder(voxel_features, voxel_num_points, *, tile_rows=8192):
    """Pallas mean-VFE.

    voxel_features:   (N, P, C) float32 (padded point slots are zero)
    voxel_num_points: (N,)      int32
    returns           (N, C)    float32
    """
    n, p, c = voxel_features.shape
    assert LANES % (p * c) == 0, "P*C must divide 128 (pad points/features)"
    vpr = LANES // (p * c)                    # voxels packed per 128-lane row
    assert n % vpr == 0, "pad num_voxels to a multiple of 128 // (P*C)"
    rows = n // vpr
    out_w = vpr * c

    # Free, contiguous reshapes -- no data movement, no extra XLA passes.
    feat_rows = voxel_features.reshape(rows, LANES)
    npts_rows = voxel_num_points.astype(jnp.int32).reshape(rows, vpr)
    s_np, b_np = _constant_matrices(p, c, vpr)
    s_mat = jnp.asarray(s_np)
    b_mat = jnp.asarray(b_np)

    tr, padded_rows = _pick_tile_rows(rows, tile_rows)
    if padded_rows != rows:                   # rare: rows has no 8-aligned divisor
        pad = padded_rows - rows
        feat_rows = jnp.pad(feat_rows, ((0, pad), (0, 0)))
        npts_rows = jnp.pad(npts_rows, ((0, pad), (0, 0)), constant_values=1)
    grid = (padded_rows // tr,)

    out_rows = pl.pallas_call(
        _make_kernel(out_w),
        out_shape=jax.ShapeDtypeStruct((padded_rows, out_w), voxel_features.dtype),
        grid_spec=pltpu.PrefetchScalarGridSpec(
            num_scalar_prefetch=0,
            grid=grid,
            in_specs=[
                pl.BlockSpec((tr, LANES), lambda i: (i, 0)),      # features
                pl.BlockSpec((tr, vpr), lambda i: (i, 0)),        # point counts
                pl.BlockSpec((LANES, LANES), lambda i: (0, 0)),   # S (resident)
                pl.BlockSpec((vpr, LANES), lambda i: (0, 0)),     # B (resident)
            ],
            out_specs=pl.BlockSpec((tr, out_w), lambda i: (i, 0)),
        ),
        compiler_params=pltpu.CompilerParams(
            dimension_semantics=("parallel",),
            vmem_limit_bytes=48 * 1024 * 1024,
        ),
    )(feat_rows, npts_rows, s_mat, b_mat)

    if padded_rows != rows:
        out_rows = out_rows[:rows]
    # (rows, VPR*C) -> (N, C) is a free, contiguous reshape.
    return out_rows.reshape(n, c)


if __name__ == "__main__":
    # Small shapes consistent with the module cfg:
    #   MAX_NUM_VOXELS -> 256, MAX_NUM_PTS_PER_VOXELS -> 8, NUM_POINT_FEATURES -> 4
    num_voxels, max_pts, num_feats = 256, 8, 4

    key = jax.random.PRNGKey(0)
    k_feat, k_npts = jax.random.split(key)

    voxel_num_points = jax.random.randint(
        k_npts, (num_voxels,), minval=0, maxval=max_pts + 1, dtype=jnp.int32)

    raw = jax.random.normal(
        k_feat, (num_voxels, max_pts, num_feats), dtype=jnp.float32)
    # Emulate PointToVoxel output: point slots beyond num_points are zero.
    pt_idx = jnp.arange(max_pts)[None, :, None]
    valid = (pt_idx < voxel_num_points[:, None, None]).astype(jnp.float32)
    voxel_features = raw * valid

    out = mean_voxel_encoder(voxel_features, voxel_num_points)
    out = jax.block_until_ready(out)

    # Reference (pure JAX, mirrors the PyTorch forward semantics).
    ref = voxel_features.sum(axis=1) / jnp.maximum(
        voxel_num_points.astype(jnp.float32), 1.0)[:, None]

    assert out.shape == (num_voxels, num_feats)
    assert jnp.allclose(out, ref, atol=1e-5, rtol=1e-5), "mismatch vs reference"
    print("KERNEL_OK")
</pallas_src>

<mosaic_0001>
module attributes {stable_mosaic.version = 11 : i64} {
  func.func @kernel(%arg0: i32, %arg1: memref<64x128xf32, #tpu.memory_space<vmem>>, %arg2: memref<64x4xi32, #tpu.memory_space<vmem>>, %arg3: memref<128x128xf32, #tpu.memory_space<vmem>>, %arg4: memref<4x128xf32, #tpu.memory_space<vmem>>, %arg5: memref<64x16xf32, #tpu.memory_space<vmem>>) attributes {dimension_semantics = [#tpu.dimension_semantics<parallel>], iteration_bounds = array<i64: 1>, scalar_prefetch = 0 : i64, scratch_operands = 0 : i64, tpu.core_type = #tpu.core_type<tc>, window_params = [{transform_indices = @transform_0, window_bounds = array<i64: 64, 128>}, {transform_indices = @transform_1, window_bounds = array<i64: 64, 4>}, {pipeline_mode = #tpu.pipeline_mode<synchronous>, transform_indices = @transform_2, window_bounds = array<i64: 128, 128>}, {pipeline_mode = #tpu.pipeline_mode<synchronous>, transform_indices = @transform_3, window_bounds = array<i64: 4, 128>}, {transform_indices = @transform_4, window_bounds = array<i64: 64, 16>}]} {
    %c0 = arith.constant 0 : index
    %c0_0 = arith.constant 0 : index
    %0 = vector.load %arg1[%c0, %c0_0] : memref<64x128xf32, #tpu.memory_space<vmem>>, vector<64x128xf32>
    %c0_1 = arith.constant 0 : index
    %c0_2 = arith.constant 0 : index
    %1 = vector.load %arg2[%c0_1, %c0_2] : memref<64x4xi32, #tpu.memory_space<vmem>>, vector<64x4xi32>
    %2 = arith.sitofp %1 : vector<64x4xi32> to vector<64x4xf32>
    %cst = arith.constant 1.000000e+00 : f32
    %3 = vector.broadcast %cst : f32 to vector<64x4xf32>
    %4 = arith.maximumf %2, %3 : vector<64x4xf32>
    %c0_3 = arith.constant 0 : index
    %c0_4 = arith.constant 0 : index
    %5 = vector.load %arg3[%c0_3, %c0_4] : memref<128x128xf32, #tpu.memory_space<vmem>>, vector<128x128xf32>
    %cst_5 = arith.constant dense<0.000000e+00> : vector<64x128xf32>
    %6 = tpu.matmul %0, %5, %cst_5 {dimension_numbers = #tpu.dot_dimension_numbers<[1], [0], [0], [1], [0, 0, 1, 1], [], []>, precision = #tpu.contract_precision<fp32>} : vector<64x128xf32>, vector<128x128xf32>, vector<64x128xf32> -> vector<64x128xf32>
    %7 = vector.extract_strided_slice %6 {offsets = [0, 0], sizes = [64, 16], strides = [1, 1]} : vector<64x128xf32> to vector<64x16xf32>
    %c0_6 = arith.constant 0 : index
    %c0_7 = arith.constant 0 : index
    %8 = vector.load %arg4[%c0_6, %c0_7] : memref<4x128xf32, #tpu.memory_space<vmem>>, vector<4x128xf32>
    %cst_8 = arith.constant dense<0.000000e+00> : vector<64x128xf32>
    %9 = tpu.matmul %4, %8, %cst_8 {dimension_numbers = #tpu.dot_dimension_numbers<[1], [0], [0], [1], [0, 0, 1, 1], [], []>} : vector<64x4xf32>, vector<4x128xf32>, vector<64x128xf32> -> vector<64x128xf32>
    %10 = vector.extract_strided_slice %9 {offsets = [0, 0], sizes = [64, 16], strides = [1, 1]} : vector<64x128xf32> to vector<64x16xf32>
    %11 = arith.divf %7, %10 : vector<64x16xf32>
    %c0_9 = arith.constant 0 : index
    %c0_10 = arith.constant 0 : index
    %12 = vector.load %arg5[%c0_9, %c0_10] : memref<64x16xf32, #tpu.memory_space<vmem>>, vector<64x16xf32>
    tpu.vector_store %arg5[%c0_9, %c0_10], %11 {strides = array<i32>} : memref<64x16xf32, #tpu.memory_space<vmem>>, vector<64x16xf32>,
    return
  }
  func.func @transform_0(%arg0: i32) -> (i32, i32) {
    %c0_i32 = arith.constant 0 : i32
    %c0_i32_0 = arith.constant 0 : i32
    return %arg0, %c0_i32 : i32, i32
  }
  func.func @transform_1(%arg0: i32) -> (i32, i32) {
    %c0_i32 = arith.constant 0 : i32
    %c0_i32_0 = arith.constant 0 : i32
    return %arg0, %c0_i32 : i32, i32
  }
  func.func @transform_2(%arg0: i32) -> (i32, i32) {
    %c0_i32 = arith.constant 0 : i32
    %c0_i32_0 = arith.constant 0 : i32
    %c0_i32_1 = arith.constant 0 : i32
    return %c0_i32, %c0_i32_0 : i32, i32
  }
  func.func @transform_3(%arg0: i32) -> (i32, i32) {
    %c0_i32 = arith.constant 0 : i32
    %c0_i32_0 = arith.constant 0 : i32
    %c0_i32_1 = arith.constant 0 : i32
    return %c0_i32, %c0_i32_0 : i32, i32
  }
  func.func @transform_4(%arg0: i32) -> (i32, i32) {
    %c0_i32 = arith.constant 0 : i32
    %c0_i32_0 = arith.constant 0 : i32
    return %arg0, %c0_i32 : i32, i32
  }
}

</mosaic_0001>

<llo_original>
// kernel: tpu_custom_call.1
$region0: #{tpu_custom_call.1}
  #allocation0 [shape = 'u32[]', space=smem, size = 0x4, offset = 0x4, fixed_abs, tag = 'smem constant byte address 0x4 - core index']
  #allocation1 [shape = 'u32[72,128]{1,0:T(1,128)}', space=vmem, size = 0x9000, scoped, tag = 'internal scratch']
  %s0 = inlined_call_operand.vmem [shape: f32[64,128], index: 0, kind: input, shape index: {}]
  %s1 = inlined_call_operand.vmem [shape: s32[64,4], index: 1, kind: input, shape index: {}]
  %s2 = inlined_call_operand.hbm [shape: f32[128,128], index: 2, kind: input, shape index: {}]
  %s3 = inlined_call_operand.vmem [shape: f32[4,128], index: 3, kind: input, shape index: {}]
  %s4 = inlined_call_operand.vmem [shape: f32[64,16], index: 4, kind: output, shape index: {}]
  %s5 = sld [smem:[#allocation0]]
  $region30: #{tpu_custom_call.1} parent=0
    _
  %s7 = ssub.s32 1, %s5
  %s8 = scalar_select 0, %s7, %s5
  $region1: #{tpu_custom_call.1} parent=0
    #allocation2 [shape = 'u8[65536]{0}', space=vmem, size = 0x10000, scoped, tag = 'input window, operand 2, single buffered']
    #allocation3 [shape = 's32[1]{0}', space=sflag, size = 0x4, scoped, tag = 'scoped memory for tpu_custom_call.1']
    %9 = vsyncpa [#allocation3], 0
    // Predicated region
    $region2: #{tpu_custom_call.1} parent=1 // pred_check
      _
    $region3: #{tpu_custom_call.1} parent=1 // pred_check_branch
      %11 = sbr.rel (0) target = $region5
    $region4: #{tpu_custom_call.1} parent=1 // pred_region
      _
    $region5: #{tpu_custom_call.1} parent=1 // pred_fallthru
      _
    // Predicated region
    $region6: #{tpu_custom_call.1} parent=1 // pred_check
      _
    $region7: #{tpu_custom_call.1} parent=1 // pred_check_branch
      %13 = sbr.rel (0) target = $region9
    $region8: #{tpu_custom_call.1} parent=1 // pred_region
      _
    $region9: #{tpu_custom_call.1} parent=1 // pred_fallthru
      _
    // Predicated region
    $region10: #{tpu_custom_call.1} parent=1 // pred_check
      _
    $region11: #{tpu_custom_call.1} parent=1 // pred_check_branch
      %15 = sbr.rel (0) target = $region13
    $region12: #{tpu_custom_call.1} parent=1 // pred_region
      %17 = vsyncadd [#allocation3], 0
      %s18 = sshll.u32 %s2, 4
      %s19 = int_to_ptr.hbm [resolvable:$true] %s18
      %s20 = sshll.u32 [#allocation2], 4
      %s21 = int_to_ptr.vmem [resolvable:$true] %s20
      %26 = dma.hbm_to_vmem [thread:$0]  %s19, 2048, %s21, [#allocation3], 128, 128, 8
    $region13: #{tpu_custom_call.1} parent=1 // pred_fallthru
      _
    // Predicated region
    $region14: #{tpu_custom_call.1} parent=1 // pred_check
      _
    $region15: #{tpu_custom_call.1} parent=1 // pred_check_branch
      %28 = sbr.rel (0) target = $region17
    $region16: #{tpu_custom_call.1} parent=1 // pred_region
      _
    $region17: #{tpu_custom_call.1} parent=1 // pred_fallthru
      _
    // Predicated region
    $region18: #{tpu_custom_call.1} parent=1 // pred_check
      _
    $region19: #{tpu_custom_call.1} parent=1 // pred_check_branch
      %30 = sbr.rel (0) target = $region21
    $region20: #{tpu_custom_call.1} parent=1 // pred_region
      %32 = dma.done [#allocation3], 2048
    $region21: #{tpu_custom_call.1} parent=1 // pred_fallthru
      _
    %v33 = vld [vmem:[%s0] sm:$0xff]
    %v34 = vld [vmem:[%s0 + $0x8] sm:$0xff]
    %v35 = vld [vmem:[%s0 + $0x10] sm:$0xff]
    %v36 = vld [vmem:[%s0 + $0x18] sm:$0xff]
    %v37 = vld [vmem:[%s0 + $0x20] sm:$0xff]
    %v38 = vld [vmem:[%s0 + $0x28] sm:$0xff]
    %v39 = vld [vmem:[%s0 + $0x30] sm:$0xff]
    %v40 = vld [vmem:[%s0 + $0x38] sm:$0xff]
    %v41 = vld [vmem:[%s1] sm:$0xff]
    %v42 = vld [vmem:[%s1 + $0x8] sm:$0xff]
    %v43 = vld [vmem:[%s1 + $0x10] sm:$0xff]
    %v44 = vld [vmem:[%s1 + $0x18] sm:$0xff]
    %v45 = vld [vmem:[%s1 + $0x20] sm:$0xff]
    %v46 = vld [vmem:[%s1 + $0x28] sm:$0xff]
    %v47 = vld [vmem:[%s1 + $0x30] sm:$0xff]
    %v48 = vld [vmem:[%s1 + $0x38] sm:$0xff]
    %v49 = vcvt.s32.f32 %v41
    %v50 = vcvt.s32.f32 %v42
    %v51 = vcvt.s32.f32 %v43
    %v52 = vcvt.s32.f32 %v44
    %v53 = vcvt.s32.f32 %v45
    %v54 = vcvt.s32.f32 %v46
    %v55 = vcvt.s32.f32 %v47
    %v56 = vcvt.s32.f32 %v48
    %v57 = vmax.f32 %v49, 1.0
    %v58 = vmax.f32 %v50, 1.0
    %v59 = vmax.f32 %v51, 1.0
    %v60 = vmax.f32 %v52, 1.0
    %v61 = vmax.f32 %v53, 1.0
    %v62 = vmax.f32 %v54, 1.0
    %v63 = vmax.f32 %v55, 1.0
    %v64 = vmax.f32 %v56, 1.0
    %v65 = vld [vmem:[#allocation2] sm:$0xff]
    %v66 = vld [vmem:[#allocation2 + $0x8] sm:$0xff]
    %v67 = vld [vmem:[#allocation2 + $0x10] sm:$0xff]
    %v68 = vld [vmem:[#allocation2 + $0x18] sm:$0xff]
    %v69 = vld [vmem:[#allocation2 + $0x20] sm:$0xff]
    %v70 = vld [vmem:[#allocation2 + $0x28] sm:$0xff]
    %v71 = vld [vmem:[#allocation2 + $0x30] sm:$0xff]
    %v72 = vld [vmem:[#allocation2 + $0x38] sm:$0xff]
    %v73 = vld [vmem:[#allocation2 + $0x40] sm:$0xff]
    %v74 = vld [vmem:[#allocation2 + $0x48] sm:$0xff]
    %v75 = vld [vmem:[#allocation2 + $0x50] sm:$0xff]
    %v76 = vld [vmem:[#allocation2 + $0x58] sm:$0xff]
    %v77 = vld [vmem:[#allocation2 + $0x60] sm:$0xff]
    %v78 = vld [vmem:[#allocation2 + $0x68] sm:$0xff]
    %v79 = vld [vmem:[#allocation2 + $0x70] sm:$0xff]
    %v80 = vld [vmem:[#allocation2 + $0x78] sm:$0xff]
    %v81 = vand.u32 %v80, 4294901760
    %82 = vmatpush.msra.mxu0 %v81
    %v83 = vand.u32 %v79, 4294901760
    %84 = vmatpush.msra.mxu0 %v83
    %v85 = vand.u32 %v78, 4294901760
    %86 = vmatpush.msra.mxu0 %v85
    %v87 = vand.u32 %v77, 4294901760
    %88 = vmatpush.msra.mxu0 %v87
    %v89 = vand.u32 %v76, 4294901760
    %90 = vmatpush.msra.mxu0 %v89
    %v91 = vand.u32 %v75, 4294901760
    %92 = vmatpush.msra.mxu0 %v91
    %v93 = vand.u32 %v74, 4294901760
    %94 = vmatpush.msra.mxu0 %v93
    %v95 = vand.u32 %v73, 4294901760
    %96 = vmatpush.msra.mxu0 %v95
    %v97 = vand.u32 %v72, 4294901760
    %98 = vmatpush.msra.mxu0 %v97
    %v99 = vand.u32 %v71, 4294901760
    %100 = vmatpush.msra.mxu0 %v99
    %v101 = vand.u32 %v70, 4294901760
    %102 = vmatpush.msra.mxu0 %v101
    %v103 = vand.u32 %v69, 4294901760
    %104 = vmatpush.msra.mxu0 %v103
    %v105 = vand.u32 %v68, 4294901760
    %106 = vmatpush.msra.mxu0 %v105
    %v107 = vand.u32 %v67, 4294901760
    %108 = vmatpush.msra.mxu0 %v107
    %v109 = vand.u32 %v66, 4294901760
    %110 = vmatpush.msra.mxu0 %v109
    %v111 = vand.u32 %v65, 4294901760
    %112 = vmatpush.msra.mxu0 %v111
    %v113 = vand.u32 %v33, 4294901760
    %v114 = vsub.f32 %v33, %v113
    %v115 = vand.u32 %v114, 4294901760
    %v116 = vsub.f32 %v114, %v115
    %v117 = vand.u32 %v116, 4294901760
    %118 = vmatmul.f32.gmra.mxu0 %v117
    %v119 = vpop.f32.mrf.mxu0
    %v120 = vadd.f32 0.0, %v119
    %v121 = vand.u32 %v34, 4294901760
    %v122 = vsub.f32 %v34, %v121
    %v123 = vand.u32 %v122, 4294901760
    %v124 = vsub.f32 %v122, %v123
    %v125 = vand.u32 %v124, 4294901760
    %126 = vmatmul.f32.gmra.mxu0 %v125
    %v127 = vpop.f32.mrf.mxu0
    %v128 = vadd.f32 0.0, %v127
    %v129 = vand.u32 %v35, 4294901760
    %v130 = vsub.f32 %v35, %v129
    %v131 = vand.u32 %v130, 4294901760
    %v132 = vsub.f32 %v130, %v131
    %v133 = vand.u32 %v132, 4294901760
    %134 = vmatmul.f32.gmra.mxu0 %v133
    %v135 = vpop.f32.mrf.mxu0
    %v136 = vadd.f32 0.0, %v135
    %v137 = vand.u32 %v36, 4294901760
    %v138 = vsub.f32 %v36, %v137
    %v139 = vand.u32 %v138, 4294901760
    %v140 = vsub.f32 %v138, %v139
    %v141 = vand.u32 %v140, 4294901760
    %142 = vmatmul.f32.gmra.mxu0 %v141
    %v143 = vpop.f32.mrf.mxu0
    %v144 = vadd.f32 0.0, %v143
    %v145 = vand.u32 %v37, 4294901760
    %v146 = vsub.f32 %v37, %v145
    %v147 = vand.u32 %v146, 4294901760
    %v148 = vsub.f32 %v146, %v147
    %v149 = vand.u32 %v148, 4294901760
    %150 = vmatmul.f32.gmra.mxu0 %v149
    %v151 = vpop.f32.mrf.mxu0
    %v152 = vadd.f32 0.0, %v151
    %v153 = vand.u32 %v38, 4294901760
    %v154 = vsub.f32 %v38, %v153
    %v155 = vand.u32 %v154, 4294901760
    %v156 = vsub.f32 %v154, %v155
    %v157 = vand.u32 %v156, 4294901760
    %158 = vmatmul.f32.gmra.mxu0 %v157
    %v159 = vpop.f32.mrf.mxu0
    %v160 = vadd.f32 0.0, %v159
    %v161 = vand.u32 %v39, 4294901760
    %v162 = vsub.f32 %v39, %v161
    %v163 = vand.u32 %v162, 4294901760
    %v164 = vsub.f32 %v162, %v163
    %v165 = vand.u32 %v164, 4294901760
    %166 = vmatmul.f32.gmra.mxu0 %v165
    %v167 = vpop.f32.mrf.mxu0
    %v168 = vadd.f32 0.0, %v167
    %v169 = vand.u32 %v40, 4294901760
    %v170 = vsub.f32 %v40, %v169
    %v171 = vand.u32 %v170, 4294901760
    %v172 = vsub.f32 %v170, %v171
    %v173 = vand.u32 %v172, 4294901760
    %174 = vmatmul.f32.gmra.mxu0 %v173
    %v175 = vpop.f32.mrf.mxu0
    %v176 = vadd.f32 0.0, %v175
    %177 = vdwg.mxu0
    %v178 = vand.u32 %v80, 4294901760
    %v179 = vsub.f32 %v80, %v178
    %v180 = vand.u32 %v179, 4294901760
    %v181 = vsub.f32 %v179, %v180
    %v182 = vand.u32 %v181, 4294901760
    %183 = vmatpush.msra.mxu0 %v182
    %v184 = vand.u32 %v79, 4294901760
    %v185 = vsub.f32 %v79, %v184
    %v186 = vand.u32 %v185, 4294901760
    %v187 = vsub.f32 %v185, %v186
    %v188 = vand.u32 %v187, 4294901760
    %189 = vmatpush.msra.mxu0 %v188
    %v190 = vand.u32 %v78, 4294901760
    %v191 = vsub.f32 %v78, %v190
    %v192 = vand.u32 %v191, 4294901760
    %v193 = vsub.f32 %v191, %v192
    %v194 = vand.u32 %v193, 4294901760
    %195 = vmatpush.msra.mxu0 %v194
    %v196 = vand.u32 %v77, 4294901760
    %v197 = vsub.f32 %v77, %v196
    %v198 = vand.u32 %v197, 4294901760
    %v199 = vsub.f32 %v197, %v198
    %v200 = vand.u32 %v199, 4294901760
    %201 = vmatpush.msra.mxu0 %v200
    %v202 = vand.u32 %v76, 4294901760
    %v203 = vsub.f32 %v76, %v202
    %v204 = vand.u32 %v203, 4294901760
    %v205 = vsub.f32 %v203, %v204
    %v206 = vand.u32 %v205, 4294901760
    %207 = vmatpush.msra.mxu0 %v206
    %v208 = vand.u32 %v75, 4294901760
    %v209 = vsub.f32 %v75, %v208
    %v210 = vand.u32 %v209, 4294901760
    %v211 = vsub.f32 %v209, %v210
    %v212 = vand.u32 %v211, 4294901760
    %213 = vmatpush.msra.mxu0 %v212
    %v214 = vand.u32 %v74, 4294901760
    %v215 = vsub.f32 %v74, %v214
    %v216 = vand.u32 %v215, 4294901760
    %v217 = vsub.f32 %v215, %v216
    %v218 = vand.u32 %v217, 4294901760
    %219 = vmatpush.msra.mxu0 %v218
    %v220 = vand.u32 %v73, 4294901760
    %v221 = vsub.f32 %v73, %v220
    %v222 = vand.u32 %v221, 4294901760
    %v223 = vsub.f32 %v221, %v222
    %v224 = vand.u32 %v223, 4294901760
    %225 = vmatpush.msra.mxu0 %v224
    %v226 = vand.u32 %v72, 4294901760
    %v227 = vsub.f32 %v72, %v226
    %v228 = vand.u32 %v227, 4294901760
    %v229 = vsub.f32 %v227, %v228
    %v230 = vand.u32 %v229, 4294901760
    %231 = vmatpush.msra.mxu0 %v230
    %v232 = vand.u32 %v71, 4294901760
    %v233 = vsub.f32 %v71, %v232
    %v234 = vand.u32 %v233, 4294901760
    %v235 = vsub.f32 %v233, %v234
    %v236 = vand.u32 %v235, 4294901760
    %237 = vmatpush.msra.mxu0 %v236
    %v238 = vand.u32 %v70, 4294901760
    %v239 = vsub.f32 %v70, %v238
    %v240 = vand.u32 %v239, 4294901760
    %v241 = vsub.f32 %v239, %v240
    %v242 = vand.u32 %v241, 4294901760
    %243 = vmatpush.msra.mxu0 %v242
    %v244 = vand.u32 %v69, 4294901760
    %v245 = vsub.f32 %v69, %v244
    %v246 = vand.u32 %v245, 4294901760
    %v247 = vsub.f32 %v245, %v246
    %v248 = vand.u32 %v247, 4294901760
    %249 = vmatpush.msra.mxu0 %v248
    %v250 = vand.u32 %v68, 4294901760
    %v251 = vsub.f32 %v68, %v250
    %v252 = vand.u32 %v251, 4294901760
    %v253 = vsub.f32 %v251, %v252
    %v254 = vand.u32 %v253, 4294901760
    %255 = vmatpush.msra.mxu0 %v254
    %v256 = vand.u32 %v67, 4294901760
    %v257 = vsub.f32 %v67, %v256
    %v258 = vand.u32 %v257, 4294901760
    %v259 = vsub.f32 %v257, %v258
    %v260 = vand.u32 %v259, 4294901760
    %261 = vmatpush.msra.mxu0 %v260
    %v262 = vand.u32 %v66, 4294901760
    %v263 = vsub.f32 %v66, %v262
    %v264 = vand.u32 %v263, 4294901760
    %v265 = vsub.f32 %v263, %v264
    %v266 = vand.u32 %v265, 4294901760
    %267 = vmatpush.msra.mxu0 %v266
    %v268 = vand.u32 %v65, 4294901760
    %v269 = vsub.f32 %v65, %v268
    %v270 = vand.u32 %v269, 4294901760
    %v271 = vsub.f32 %v269, %v270
    %v272 = vand.u32 %v271, 4294901760
    %273 = vmatpush.msra.mxu0 %v272
    %v274 = vand.u32 %v33, 4294901760
    %275 = vmatmul.f32.gmra.mxu0 %v274
    %v276 = vpop.f32.mrf.mxu0
    %v277 = vadd.f32 %v120, %v276
    %v278 = vand.u32 %v34, 4294901760
    %279 = vmatmul.f32.gmra.mxu0 %v278
    %v280 = vpop.f32.mrf.mxu0
    %v281 = vadd.f32 %v128, %v280
    %v282 = vand.u32 %v35, 4294901760
    %283 = vmatmul.f32.gmra.mxu0 %v282
    %v284 = vpop.f32.mrf.mxu0
    %v285 = vadd.f32 %v136, %v284
    %v286 = vand.u32 %v36, 4294901760
    %287 = vmatmul.f32.gmra.mxu0 %v286
    %v288 = vpop.f32.mrf.mxu0
    %v289 = vadd.f32 %v144, %v288
    %v290 = vand.u32 %v37, 4294901760
    %291 = vmatmul.f32.gmra.mxu0 %v290
    %v292 = vpop.f32.mrf.mxu0
    %v293 = vadd.f32 %v152, %v292
    %v294 = vand.u32 %v38, 4294901760
    %295 = vmatmul.f32.gmra.mxu0 %v294
    %v296 = vpop.f32.mrf.mxu0
    %v297 = vadd.f32 %v160, %v296
    %v298 = vand.u32 %v39, 4294901760
    %299 = vmatmul.f32.gmra.mxu0 %v298
    %v300 = vpop.f32.mrf.mxu0
    %v301 = vadd.f32 %v168, %v300
    %v302 = vand.u32 %v40, 4294901760
    %303 = vmatmul.f32.gmra.mxu0 %v302
    %v304 = vpop.f32.mrf.mxu0
    %v305 = vadd.f32 %v176, %v304
    %306 = vdwg.mxu0
    %v307 = vand.u32 %v80, 4294901760
    %v308 = vsub.f32 %v80, %v307
    %309 = vmatpush.msra.mxu0 %v308
    %v310 = vand.u32 %v79, 4294901760
    %v311 = vsub.f32 %v79, %v310
    %312 = vmatpush.msra.mxu0 %v311
    %v313 = vand.u32 %v78, 4294901760
    %v314 = vsub.f32 %v78, %v313
    %315 = vmatpush.msra.mxu0 %v314
    %v316 = vand.u32 %v77, 4294901760
    %v317 = vsub.f32 %v77, %v316
    %318 = vmatpush.msra.mxu0 %v317
    %v319 = vand.u32 %v76, 4294901760
    %v320 = vsub.f32 %v76, %v319
    %321 = vmatpush.msra.mxu0 %v320
    %v322 = vand.u32 %v75, 4294901760
    %v323 = vsub.f32 %v75, %v322
    %324 = vmatpush.msra.mxu0 %v323
    %v325 = vand.u32 %v74, 4294901760
    %v326 = vsub.f32 %v74, %v325
    %327 = vmatpush.msra.mxu0 %v326
    %v328 = vand.u32 %v73, 4294901760
    %v329 = vsub.f32 %v73, %v328
    %330 = vmatpush.msra.mxu0 %v329
    %v331 = vand.u32 %v72, 4294901760
    %v332 = vsub.f32 %v72, %v331
    %333 = vmatpush.msra.mxu0 %v332
    %v334 = vand.u32 %v71, 4294901760
    %v335 = vsub.f32 %v71, %v334
    %336 = vmatpush.msra.mxu0 %v335
    %v337 = vand.u32 %v70, 4294901760
    %v338 = vsub.f32 %v70, %v337
    %339 = vmatpush.msra.mxu0 %v338
    %v340 = vand.u32 %v69, 4294901760
    %v341 = vsub.f32 %v69, %v340
    %342 = vmatpush.msra.mxu0 %v341
    %v343 = vand.u32 %v68, 4294901760
    %v344 = vsub.f32 %v68, %v343
    %345 = vmatpush.msra.mxu0 %v344
    %v346 = vand.u32 %v67, 4294901760
    %v347 = vsub.f32 %v67, %v346
    %348 = vmatpush.msra.mxu0 %v347
    %v349 = vand.u32 %v66, 4294901760
    %v350 = vsub.f32 %v66, %v349
    %351 = vmatpush.msra.mxu0 %v350
    %v352 = vand.u32 %v65, 4294901760
    %v353 = vsub.f32 %v65, %v352
    %354 = vmatpush.msra.mxu0 %v353
    %v355 = vand.u32 %v33, 4294901760
    %v356 = vsub.f32 %v33, %v355
    %357 = vmatmul.f32.gmra.mxu0 %v356
    %v358 = vpop.f32.mrf.mxu0
    %v359 = vadd.f32 %v277, %v358
    %v360 = vand.u32 %v34, 4294901760
    %v361 = vsub.f32 %v34, %v360
    %362 = vmatmul.f32.gmra.mxu0 %v361
    %v363 = vpop.f32.mrf.mxu0
    %v364 = vadd.f32 %v281, %v363
    %v365 = vand.u32 %v35, 4294901760
    %v366 = vsub.f32 %v35, %v365
    %367 = vmatmul.f32.gmra.mxu0 %v366
    %v368 = vpop.f32.mrf.mxu0
    %v369 = vadd.f32 %v285, %v368
    %v370 = vand.u32 %v36, 4294901760
    %v371 = vsub.f32 %v36, %v370
    %372 = vmatmul.f32.gmra.mxu0 %v371
    %v373 = vpop.f32.mrf.mxu0
    %v374 = vadd.f32 %v289, %v373
    %v375 = vand.u32 %v37, 4294901760
    %v376 = vsub.f32 %v37, %v375
    %377 = vmatmul.f32.gmra.mxu0 %v376
    %v378 = vpop.f32.mrf.mxu0
    %v379 = vadd.f32 %v293, %v378
    %v380 = vand.u32 %v38, 4294901760
    %v381 = vsub.f32 %v38, %v380
    %382 = vmatmul.f32.gmra.mxu0 %v381
    %v383 = vpop.f32.mrf.mxu0
    %v384 = vadd.f32 %v297, %v383
    %v385 = vand.u32 %v39, 4294901760
    %v386 = vsub.f32 %v39, %v385
    %387 = vmatmul.f32.gmra.mxu0 %v386
    %v388 = vpop.f32.mrf.mxu0
    %v389 = vadd.f32 %v301, %v388
    %v390 = vand.u32 %v40, 4294901760
    %v391 = vsub.f32 %v40, %v390
    %392 = vmatmul.f32.gmra.mxu0 %v391
    %v393 = vpop.f32.mrf.mxu0
    %v394 = vadd.f32 %v305, %v393
    %395 = vdwg.mxu0
    %v396 = vand.u32 %v80, 4294901760
    %397 = vmatpush.msra.mxu0 %v396
    %v398 = vand.u32 %v79, 4294901760
    %399 = vmatpush.msra.mxu0 %v398
    %v400 = vand.u32 %v78, 4294901760
    %401 = vmatpush.msra.mxu0 %v400
    %v402 = vand.u32 %v77, 4294901760
    %403 = vmatpush.msra.mxu0 %v402
    %v404 = vand.u32 %v76, 4294901760
    %405 = vmatpush.msra.mxu0 %v404
    %v406 = vand.u32 %v75, 4294901760
    %407 = vmatpush.msra.mxu0 %v406
    %v408 = vand.u32 %v74, 4294901760
    %409 = vmatpush.msra.mxu0 %v408
    %v410 = vand.u32 %v73, 4294901760
    %411 = vmatpush.msra.mxu0 %v410
    %v412 = vand.u32 %v72, 4294901760
    %413 = vmatpush.msra.mxu0 %v412
    %v414 = vand.u32 %v71, 4294901760
    %415 = vmatpush.msra.mxu0 %v414
    %v416 = vand.u32 %v70, 4294901760
    %417 = vmatpush.msra.mxu0 %v416
    %v418 = vand.u32 %v69, 4294901760
    %419 = vmatpush.msra.mxu0 %v418
    %v420 = vand.u32 %v68, 4294901760
    %421 = vmatpush.msra.mxu0 %v420
    %v422 = vand.u32 %v67, 4294901760
    %423 = vmatpush.msra.mxu0 %v422
    %v424 = vand.u32 %v66, 4294901760
    %425 = vmatpush.msra.mxu0 %v424
    %v426 = vand.u32 %v65, 4294901760
    %427 = vmatpush.msra.mxu0 %v426
    %v428 = vand.u32 %v33, 4294901760
    %v429 = vsub.f32 %v33, %v428
    %v430 = vand.u32 %v429, 4294901760
    %431 = vmatmul.f32.gmra.mxu0 %v430
    %v432 = vpop.f32.mrf.mxu0
    %v433 = vadd.f32 %v359, %v432
    %v434 = vand.u32 %v34, 4294901760
    %v435 = vsub.f32 %v34, %v434
    %v436 = vand.u32 %v435, 4294901760
    %437 = vmatmul.f32.gmra.mxu0 %v436
    %v438 = vpop.f32.mrf.mxu0
    %v439 = vadd.f32 %v364, %v438
    %v440 = vand.u32 %v35, 4294901760
    %v441 = vsub.f32 %v35, %v440
    %v442 = vand.u32 %v441, 4294901760
    %443 = vmatmul.f32.gmra.mxu0 %v442
    %v444 = vpop.f32.mrf.mxu0
    %v445 = vadd.f32 %v369, %v444
    %v446 = vand.u32 %v36, 4294901760
    %v447 = vsub.f32 %v36, %v446
    %v448 = vand.u32 %v447, 4294901760
    %449 = vmatmul.f32.gmra.mxu0 %v448
    %v450 = vpop.f32.mrf.mxu0
    %v451 = vadd.f32 %v374, %v450
    %v452 = vand.u32 %v37, 4294901760
    %v453 = vsub.f32 %v37, %v452
    %v454 = vand.u32 %v453, 4294901760
    %455 = vmatmul.f32.gmra.mxu0 %v454
    %v456 = vpop.f32.mrf.mxu0
    %v457 = vadd.f32 %v379, %v456
    %v458 = vand.u32 %v38, 4294901760
    %v459 = vsub.f32 %v38, %v458
    %v460 = vand.u32 %v459, 4294901760
    %461 = vmatmul.f32.gmra.mxu0 %v460
    %v462 = vpop.f32.mrf.mxu0
    %v463 = vadd.f32 %v384, %v462
    %v464 = vand.u32 %v39, 4294901760
    %v465 = vsub.f32 %v39, %v464
    %v466 = vand.u32 %v465, 4294901760
    %467 = vmatmul.f32.gmra.mxu0 %v466
    %v468 = vpop.f32.mrf.mxu0
    %v469 = vadd.f32 %v389, %v468
    %v470 = vand.u32 %v40, 4294901760
    %v471 = vsub.f32 %v40, %v470
    %v472 = vand.u32 %v471, 4294901760
    %473 = vmatmul.f32.gmra.mxu0 %v472
    %v474 = vpop.f32.mrf.mxu0
    %v475 = vadd.f32 %v394, %v474
    %476 = vdwg.mxu0
    %v477 = vand.u32 %v80, 4294901760
    %v478 = vsub.f32 %v80, %v477
    %v479 = vand.u32 %v478, 4294901760
    %480 = vmatpush.msra.mxu0 %v479
    %v481 = vand.u32 %v79, 4294901760
    %v482 = vsub.f32 %v79, %v481
    %v483 = vand.u32 %v482, 4294901760
    %484 = vmatpush.msra.mxu0 %v483
    %v485 = vand.u32 %v78, 4294901760
    %v486 = vsub.f32 %v78, %v485
    %v487 = vand.u32 %v486, 4294901760
    %488 = vmatpush.msra.mxu0 %v487
    %v489 = vand.u32 %v77, 4294901760
    %v490 = vsub.f32 %v77, %v489
    %v491 = vand.u32 %v490, 4294901760
    %492 = vmatpush.msra.mxu0 %v491
    %v493 = vand.u32 %v76, 4294901760
    %v494 = vsub.f32 %v76, %v493
    %v495 = vand.u32 %v494, 4294901760
    %496 = vmatpush.msra.mxu0 %v495
    %v497 = vand.u32 %v75, 4294901760
    %v498 = vsub.f32 %v75, %v497
    %v499 = vand.u32 %v498, 4294901760
    %500 = vmatpush.msra.mxu0 %v499
    %v501 = vand.u32 %v74, 4294901760
    %v502 = vsub.f32 %v74, %v501
    %v503 = vand.u32 %v502, 4294901760
    %504 = vmatpush.msra.mxu0 %v503
    %v505 = vand.u32 %v73, 4294901760
    %v506 = vsub.f32 %v73, %v505
    %v507 = vand.u32 %v506, 4294901760
    %508 = vmatpush.msra.mxu0 %v507
    %v509 = vand.u32 %v72, 4294901760
    %v510 = vsub.f32 %v72, %v509
    %v511 = vand.u32 %v510, 4294901760
    %512 = vmatpush.msra.mxu0 %v511
    %v513 = vand.u32 %v71, 4294901760
    %v514 = vsub.f32 %v71, %v513
    %v515 = vand.u32 %v514, 4294901760
    %516 = vmatpush.msra.mxu0 %v515
    %v517 = vand.u32 %v70, 4294901760
    %v518 = vsub.f32 %v70, %v517
    %v519 = vand.u32 %v518, 4294901760
    %520 = vmatpush.msra.mxu0 %v519
    %v521 = vand.u32 %v69, 4294901760
    %v522 = vsub.f32 %v69, %v521
    %v523 = vand.u32 %v522, 4294901760
    %524 = vmatpush.msra.mxu0 %v523
    %v525 = vand.u32 %v68, 4294901760
    %v526 = vsub.f32 %v68, %v525
    %v527 = vand.u32 %v526, 4294901760
    %528 = vmatpush.msra.mxu0 %v527
    %v529 = vand.u32 %v67, 4294901760
    %v530 = vsub.f32 %v67, %v529
    %v531 = vand.u32 %v530, 4294901760
    %532 = vmatpush.msra.mxu0 %v531
    %v533 = vand.u32 %v66, 4294901760
    %v534 = vsub.f32 %v66, %v533
    %v535 = vand.u32 %v534, 4294901760
    %536 = vmatpush.msra.mxu0 %v535
    %v537 = vand.u32 %v65, 4294901760
    %v538 = vsub.f32 %v65, %v537
    %v539 = vand.u32 %v538, 4294901760
    %540 = vmatpush.msra.mxu0 %v539
    %v541 = vand.u32 %v33, 4294901760
    %542 = vmatmul.f32.gmra.mxu0 %v541
    %v543 = vpop.f32.mrf.mxu0
    %v544 = vadd.f32 %v433, %v543
    %v545 = vand.u32 %v34, 4294901760
    %546 = vmatmul.f32.gmra.mxu0 %v545
    %v547 = vpop.f32.mrf.mxu0
    %v548 = vadd.f32 %v439, %v547
    %v549 = vand.u32 %v35, 4294901760
    %550 = vmatmul.f32.gmra.mxu0 %v549
    %v551 = vpop.f32.mrf.mxu0
    %v552 = vadd.f32 %v445, %v551
    %v553 = vand.u32 %v36, 4294901760
    %554 = vmatmul.f32.gmra.mxu0 %v553
    %v555 = vpop.f32.mrf.mxu0
    %v556 = vadd.f32 %v451, %v555
    %v557 = vand.u32 %v37, 4294901760
    %558 = vmatmul.f32.gmra.mxu0 %v557
    %v559 = vpop.f32.mrf.mxu0
    %v560 = vadd.f32 %v457, %v559
    %v561 = vand.u32 %v38, 4294901760
    %562 = vmatmul.f32.gmra.mxu0 %v561
    %v563 = vpop.f32.mrf.mxu0
    %v564 = vadd.f32 %v463, %v563
    %v565 = vand.u32 %v39, 4294901760
    %566 = vmatmul.f32.gmra.mxu0 %v565
    %v567 = vpop.f32.mrf.mxu0
    %v568 = vadd.f32 %v469, %v567
    %v569 = vand.u32 %v40, 4294901760
    %570 = vmatmul.f32.gmra.mxu0 %v569
    %v571 = vpop.f32.mrf.mxu0
    %v572 = vadd.f32 %v475, %v571
    %573 = vdwg.mxu0
    %v574 = vand.u32 %v80, 4294901760
    %575 = vmatpush.msra.mxu0 %v574
    %v576 = vand.u32 %v79, 4294901760
    %577 = vmatpush.msra.mxu0 %v576
    %v578 = vand.u32 %v78, 4294901760
    %579 = vmatpush.msra.mxu0 %v578
    %v580 = vand.u32 %v77, 4294901760
    %581 = vmatpush.msra.mxu0 %v580
    %v582 = vand.u32 %v76, 4294901760
    %583 = vmatpush.msra.mxu0 %v582
    %v584 = vand.u32 %v75, 4294901760
    %585 = vmatpush.msra.mxu0 %v584
    %v586 = vand.u32 %v74, 4294901760
    %587 = vmatpush.msra.mxu0 %v586
    %v588 = vand.u32 %v73, 4294901760
    %589 = vmatpush.msra.mxu0 %v588
    %v590 = vand.u32 %v72, 4294901760
    %591 = vmatpush.msra.mxu0 %v590
    %v592 = vand.u32 %v71, 4294901760
    %593 = vmatpush.msra.mxu0 %v592
    %v594 = vand.u32 %v70, 4294901760
    %595 = vmatpush.msra.mxu0 %v594
    %v596 = vand.u32 %v69, 4294901760
    %597 = vmatpush.msra.mxu0 %v596
    %v598 = vand.u32 %v68, 4294901760
    %599 = vmatpush.msra.mxu0 %v598
    %v600 = vand.u32 %v67, 4294901760
    %601 = vmatpush.msra.mxu0 %v600
    %v602 = vand.u32 %v66, 4294901760
    %603 = vmatpush.msra.mxu0 %v602
    %v604 = vand.u32 %v65, 4294901760
    %605 = vmatpush.msra.mxu0 %v604
    %v606 = vand.u32 %v33, 4294901760
    %607 = vmatmul.f32.gmra.mxu0 %v606
    %v608 = vpop.f32.mrf.mxu0
    %v609 = vadd.f32 %v544, %v608
    %v610 = vand.u32 %v34, 4294901760
    %611 = vmatmul.f32.gmra.mxu0 %v610
    %v612 = vpop.f32.mrf.mxu0
    %v613 = vadd.f32 %v548, %v612
    %v614 = vand.u32 %v35, 4294901760
    %615 = vmatmul.f32.gmra.mxu0 %v614
    %v616 = vpop.f32.mrf.mxu0
    %v617 = vadd.f32 %v552, %v616
    %v618 = vand.u32 %v36, 4294901760
    %619 = vmatmul.f32.gmra.mxu0 %v618
    %v620 = vpop.f32.mrf.mxu0
    %v621 = vadd.f32 %v556, %v620
    %v622 = vand.u32 %v37, 4294901760
    %623 = vmatmul.f32.gmra.mxu0 %v622
    %v624 = vpop.f32.mrf.mxu0
    %v625 = vadd.f32 %v560, %v624
    %v626 = vand.u32 %v38, 4294901760
    %627 = vmatmul.f32.gmra.mxu0 %v626
    %v628 = vpop.f32.mrf.mxu0
    %v629 = vadd.f32 %v564, %v628
    %v630 = vand.u32 %v39, 4294901760
    %631 = vmatmul.f32.gmra.mxu0 %v630
    %v632 = vpop.f32.mrf.mxu0
    %v633 = vadd.f32 %v568, %v632
    %v634 = vand.u32 %v40, 4294901760
    %635 = vmatmul.f32.gmra.mxu0 %v634
    %v636 = vpop.f32.mrf.mxu0
    %v637 = vadd.f32 %v572, %v636
    %638 = vdwg.mxu0
    %v639 = vld [vmem:[%s3] sm:$0xf]
    %vm640 = vcmask 31744
    %v642 = vsel %vm640, %v57, 0
    %v645 = vsel %vm640, %v58, 0
    %v648 = vsel %vm640, %v59, 0
    %v651 = vsel %vm640, %v60, 0
    %v654 = vsel %vm640, %v61, 0
    %v657 = vsel %vm640, %v62, 0
    %v660 = vsel %vm640, %v63, 0
    %v663 = vsel %vm640, %v64, 0
    %vm665 = vcmask 1043456
    %v667 = vsel %vm665, %v639, 0
    %669 = vmatpush.msra.mxu0 0.0
    %670 = vmatpush.msra.mxu0 0.0
    %671 = vmatpush.msra.mxu0 0.0
    %672 = vmatpush.msra.mxu0 0.0
    %673 = vmatpush.msra.mxu0 0.0
    %674 = vmatpush.msra.mxu0 0.0
    %675 = vmatpush.msra.mxu0 0.0
    %676 = vmatpush.msra.mxu0 0.0
    %677 = vmatpush.msra.mxu0 0.0
    %678 = vmatpush.msra.mxu0 0.0
    %679 = vmatpush.msra.mxu0 0.0
    %680 = vmatpush.msra.mxu0 0.0
    %681 = vmatpush.msra.mxu0 0.0
    %682 = vmatpush.msra.mxu0 0.0
    %683 = vmatpush.msra.mxu0 0.0
    %684 = vmatpush.msra.mxu0 %v667
    %685 = vmatmul.f32.gmra.mxu0 %v642
    %v686 = vpop.f32.mrf.mxu0
    %v687 = vadd.f32 0.0, %v686
    %688 = vmatmul.f32.gmra.mxu0 %v645
    %v689 = vpop.f32.mrf.mxu0
    %v690 = vadd.f32 0.0, %v689
    %691 = vmatmul.f32.gmra.mxu0 %v648
    %v692 = vpop.f32.mrf.mxu0
    %v693 = vadd.f32 0.0, %v692
    %694 = vmatmul.f32.gmra.mxu0 %v651
    %v695 = vpop.f32.mrf.mxu0
    %v696 = vadd.f32 0.0, %v695
    %697 = vmatmul.f32.gmra.mxu0 %v654
    %v698 = vpop.f32.mrf.mxu0
    %v699 = vadd.f32 0.0, %v698
    %700 = vmatmul.f32.gmra.mxu0 %v657
    %v701 = vpop.f32.mrf.mxu0
    %v702 = vadd.f32 0.0, %v701
    %703 = vmatmul.f32.gmra.mxu0 %v660
    %v704 = vpop.f32.mrf.mxu0
    %v705 = vadd.f32 0.0, %v704
    %706 = vmatmul.f32.gmra.mxu0 %v663
    %v707 = vpop.f32.mrf.mxu0
    %v708 = vadd.f32 0.0, %v707
    %709 = vdwg.mxu0
    %v710 = vrcp.pop %v687
    %v711 = vmul.f32 %v687, %v710
    %v712 = vsub.f32 1.0, %v711
    %v713 = vmul.f32 %v710, %v712
    %v714 = vadd.f32 %v710, %v713
    %vm715 = vweird.f32 %v687
    %vm716 = vweird.f32 %v710
    %vm717 = vmor %vm715, %vm716
    %v718 = vsel %vm717, %v710, %v714
    %v719 = vand.u32 2147483647, %v687
    %vm720 = vcmp.eq.f32.partialorder %v719, 8.507059e+37
    %v721 = vand.u32 %v687, 2147483648
    %v722 = vor.u32 1.1754944e-38, %v721
    %v723 = vsel %vm720, %v722, %v718
    %v724 = vmul.f32 %v609, %v723
    %v725 = vrcp.pop %v690
    %v726 = vmul.f32 %v690, %v725
    %v727 = vsub.f32 1.0, %v726
    %v728 = vmul.f32 %v725, %v727
    %v729 = vadd.f32 %v725, %v728
    %vm730 = vweird.f32 %v690
    %vm731 = vweird.f32 %v725
    %vm732 = vmor %vm730, %vm731
    %v733 = vsel %vm732, %v725, %v729
    %v734 = vand.u32 2147483647, %v690
    %vm735 = vcmp.eq.f32.partialorder %v734, 8.507059e+37
    %v736 = vand.u32 %v690, 2147483648
    %v737 = vor.u32 1.1754944e-38, %v736
    %v738 = vsel %vm735, %v737, %v733
    %v739 = vmul.f32 %v613, %v738
    %v740 = vrcp.pop %v693
    %v741 = vmul.f32 %v693, %v740
    %v742 = vsub.f32 1.0, %v741
    %v743 = vmul.f32 %v740, %v742
    %v744 = vadd.f32 %v740, %v743
    %vm745 = vweird.f32 %v693
    %vm746 = vweird.f32 %v740
    %vm747 = vmor %vm745, %vm746
    %v748 = vsel %vm747, %v740, %v744
    %v749 = vand.u32 2147483647, %v693
    %vm750 = vcmp.eq.f32.partialorder %v749, 8.507059e+37
    %v751 = vand.u32 %v693, 2147483648
    %v752 = vor.u32 1.1754944e-38, %v751
    %v753 = vsel %vm750, %v752, %v748
    %v754 = vmul.f32 %v617, %v753
    %v755 = vrcp.pop %v696
    %v756 = vmul.f32 %v696, %v755
    %v757 = vsub.f32 1.0, %v756
    %v758 = vmul.f32 %v755, %v757
    %v759 = vadd.f32 %v755, %v758
    %vm760 = vweird.f32 %v696
    %vm761 = vweird.f32 %v755
    %vm762 = vmor %vm760, %vm761
    %v763 = vsel %vm762, %v755, %v759
    %v764 = vand.u32 2147483647, %v696
    %vm765 = vcmp.eq.f32.partialorder %v764, 8.507059e+37
    %v766 = vand.u32 %v696, 2147483648
    %v767 = vor.u32 1.1754944e-38, %v766
    %v768 = vsel %vm765, %v767, %v763
    %v769 = vmul.f32 %v621, %v768
    %v770 = vrcp.pop %v699
    %v771 = vmul.f32 %v699, %v770
    %v772 = vsub.f32 1.0, %v771
    %v773 = vmul.f32 %v770, %v772
    %v774 = vadd.f32 %v770, %v773
    %vm775 = vweird.f32 %v699
    %vm776 = vweird.f32 %v770
    %vm777 = vmor %vm775, %vm776
    %v778 = vsel %vm777, %v770, %v774
    %v779 = vand.u32 2147483647, %v699
    %vm780 = vcmp.eq.f32.partialorder %v779, 8.507059e+37
    %v781 = vand.u32 %v699, 2147483648
    %v782 = vor.u32 1.1754944e-38, %v781
    %v783 = vsel %vm780, %v782, %v778
    %v784 = vmul.f32 %v625, %v783
    %v785 = vrcp.pop %v702
    %v786 = vmul.f32 %v702, %v785
    %v787 = vsub.f32 1.0, %v786
    %v788 = vmul.f32 %v785, %v787
    %v789 = vadd.f32 %v785, %v788
    %vm790 = vweird.f32 %v702
    %vm791 = vweird.f32 %v785
    %vm792 = vmor %vm790, %vm791
    %v793 = vsel %vm792, %v785, %v789
    %v794 = vand.u32 2147483647, %v702
    %vm795 = vcmp.eq.f32.partialorder %v794, 8.507059e+37
    %v796 = vand.u32 %v702, 2147483648
    %v797 = vor.u32 1.1754944e-38, %v796
    %v798 = vsel %vm795, %v797, %v793
    %v799 = vmul.f32 %v629, %v798
    %v800 = vrcp.pop %v705
    %v801 = vmul.f32 %v705, %v800
    %v802 = vsub.f32 1.0, %v801
    %v803 = vmul.f32 %v800, %v802
    %v804 = vadd.f32 %v800, %v803
    %vm805 = vweird.f32 %v705
    %vm806 = vweird.f32 %v800
    %vm807 = vmor %vm805, %vm806
    %v808 = vsel %vm807, %v800, %v804
    %v809 = vand.u32 2147483647, %v705
    %vm810 = vcmp.eq.f32.partialorder %v809, 8.507059e+37
    %v811 = vand.u32 %v705, 2147483648
    %v812 = vor.u32 1.1754944e-38, %v811
    %v813 = vsel %vm810, %v812, %v808
    %v814 = vmul.f32 %v633, %v813
    %v815 = vrcp.pop %v708
    %v816 = vmul.f32 %v708, %v815
    %v817 = vsub.f32 1.0, %v816
    %v818 = vmul.f32 %v815, %v817
    %v819 = vadd.f32 %v815, %v818
    %vm820 = vweird.f32 %v708
    %vm821 = vweird.f32 %v815
    %vm822 = vmor %vm820, %vm821
    %v823 = vsel %vm822, %v815, %v819
    %v824 = vand.u32 2147483647, %v708
    %vm825 = vcmp.eq.f32.partialorder %v824, 8.507059e+37
    %v826 = vand.u32 %v708, 2147483648
    %v827 = vor.u32 1.1754944e-38, %v826
    %v828 = vsel %vm825, %v827, %v823
    %v829 = vmul.f32 %v637, %v828
    %vm830 = vcmask 130048
    %831 = vst.msk [vmem:[%s4] sm:$0xff] %vm830, %v724
    %832 = vst.msk [vmem:[%s4 + $0x8] sm:$0xff] %vm830, %v739
    %833 = vst.msk [vmem:[%s4 + $0x10] sm:$0xff] %vm830, %v754
    %834 = vst.msk [vmem:[%s4 + $0x18] sm:$0xff] %vm830, %v769
    %835 = vst.msk [vmem:[%s4 + $0x20] sm:$0xff] %vm830, %v784
    %836 = vst.msk [vmem:[%s4 + $0x28] sm:$0xff] %vm830, %v799
    %837 = vst.msk [vmem:[%s4 + $0x30] sm:$0xff] %vm830, %v814
    %838 = vst.msk [vmem:[%s4 + $0x38] sm:$0xff] %vm830, %v829
    // Predicated region
    $region22: #{tpu_custom_call.1} parent=1 // pred_check
      _
    $region23: #{tpu_custom_call.1} parent=1 // pred_check_branch
      %840 = sbr.rel (0) target = $region25
    $region24: #{tpu_custom_call.1} parent=1 // pred_region
      _
    $region25: #{tpu_custom_call.1} parent=1 // pred_fallthru
      _
    // Predicated region
    $region26: #{tpu_custom_call.1} parent=1 // pred_check
      _
    $region27: #{tpu_custom_call.1} parent=1 // pred_check_branch
      %842 = sbr.rel (0) target = $region29
    $region28: #{tpu_custom_call.1} parent=1 // pred_region
      _
    $region29: #{tpu_custom_call.1} parent=1 // pred_fallthru
      _
    %843 = vsyncpa [#allocation3], 1

</llo_original>
